<compile_context>
chip_gen: v6e
topology: v6e:2x2x1
jax: 0.10.0
libtpu: 0.0.40
codegen_flags: <defaults>
</compile_context>

<pallas_src>
import jax
import jax.numpy as jnp
from jax.experimental import pallas as pl
from jax.experimental.pallas import tpu as pltpu


def _round_up(x: int, m: int) -> int:
    return (x + m - 1) // m * m


def _sigmoid_f32(z):
    # exp goes to the EUP; keep everything f32 (v5e-safe).
    return 1.0 / (1.0 + jnp.exp(-z))


def _mlp_kernel(x_ref, w_ref, b_ref, o_ref):
    # x_ref: (TM, D) bf16, w_ref: (3, D, D) bf16, b_ref: (3, 1, D) f32,
    # o_ref: (TM, D) f32.  All matmuls: bf16 x bf16 -> f32 accumulation on MXU.
    h = x_ref[...]                                                    # bf16
    z = jnp.dot(h, w_ref[0], preferred_element_type=jnp.float32) + b_ref[0]
    h = _sigmoid_f32(z).astype(jnp.bfloat16)

    z = jnp.dot(h, w_ref[1], preferred_element_type=jnp.float32) + b_ref[1]
    h = _sigmoid_f32(z).astype(jnp.bfloat16)

    z = jnp.dot(h, w_ref[2], preferred_element_type=jnp.float32) + b_ref[2]
    o_ref[...] = z                                                    # f32, lane-dense


def mlp_forward(x, w1, b1, w2, b2, w3, b3, *, block_m=256):
    """Fused 3-layer MLP forward.

    x:  (B, input_size) f32
    w1: (input_size, h1), b1: (1, h1)     (weights = PyTorch weight.T)
    w2: (h1, h2),         b2: (1, h2)
    w3: (h2, out),        b3: (1, out)
    returns (B, out) f32
    """
    B, in_size = x.shape
    h1_n = w1.shape[1]
    h2_n = w2.shape[1]
    out_size = w3.shape[1]

    # Common lane-dense padded feature width.
    D = _round_up(max(in_size, h1_n, h2_n, out_size), 128)

    # Batch tile: modest (<= block_m) to keep live vregs bounded; pad B up.
    TM = block_m if B >= block_m else _round_up(max(B, 8), 8)
    B_pad = _round_up(B, TM)

    # --- Pack parameters: one weight slab + one bias slab (fewer DMAs). ---
    wp = jnp.zeros((3, D, D), jnp.bfloat16)
    wp = wp.at[0, :in_size, :h1_n].set(w1.astype(jnp.bfloat16))
    wp = wp.at[1, :h1_n, :h2_n].set(w2.astype(jnp.bfloat16))
    wp = wp.at[2, :h2_n, :out_size].set(w3.astype(jnp.bfloat16))

    bp = jnp.zeros((3, 1, D), jnp.float32)
    bp = bp.at[0, 0, :h1_n].set(b1.reshape(-1).astype(jnp.float32))
    bp = bp.at[1, 0, :h2_n].set(b2.reshape(-1).astype(jnp.float32))
    bp = bp.at[2, 0, :out_size].set(b3.reshape(-1).astype(jnp.float32))

    xp = jnp.zeros((B_pad, D), jnp.bfloat16)
    xp = xp.at[:B, :in_size].set(x.astype(jnp.bfloat16))

    grid = (B_pad // TM,)
    out_padded = pl.pallas_call(
        _mlp_kernel,
        out_shape=jax.ShapeDtypeStruct((B_pad, D), jnp.float32),
        grid_spec=pltpu.PrefetchScalarGridSpec(
            num_scalar_prefetch=0,
            grid=grid,
            in_specs=[
                pl.BlockSpec((TM, D), lambda i: (i, 0)),        # x tile (pipelined)
                pl.BlockSpec((3, D, D), lambda i: (0, 0, 0)),   # weights (resident)
                pl.BlockSpec((3, 1, D), lambda i: (0, 0, 0)),   # biases (resident)
            ],
            out_specs=pl.BlockSpec((TM, D), lambda i: (i, 0)),
        ),
        compiler_params=pltpu.CompilerParams(
            dimension_semantics=("parallel",),
            vmem_limit_bytes=32 * 1024 * 1024,
        ),
    )(xp, wp, bp)

    return out_padded[:B, :out_size]


def init_params(key, input_size, h1, h2, output_size):
    """Deterministic init mimicking nn.Linear's U(-1/sqrt(fan_in), +1/sqrt(fan_in))."""
    ks = jax.random.split(key, 6)

    def linear(kw, kb, fan_in, fan_out):
        bound = 1.0 / jnp.sqrt(fan_in)
        w = jax.random.uniform(kw, (fan_in, fan_out), jnp.float32, -bound, bound)
        b = jax.random.uniform(kb, (1, fan_out), jnp.float32, -bound, bound)
        return w, b

    w1, b1 = linear(ks[0], ks[1], input_size, h1)
    w2, b2 = linear(ks[2], ks[3], h1, h2)
    w3, b3 = linear(ks[4], ks[5], h2, output_size)
    return w1, b1, w2, b2, w3, b3


def reference_forward_bf16(x, w1, b1, w2, b2, w3, b3):
    """Pure-JAX reference that mimics the kernel's bf16 MXU inputs / f32 acc."""
    bf, f32 = jnp.bfloat16, jnp.float32
    z = jnp.dot(x.astype(bf), w1.astype(bf), preferred_element_type=f32) + b1
    h = 1.0 / (1.0 + jnp.exp(-z))
    z = jnp.dot(h.astype(bf), w2.astype(bf), preferred_element_type=f32) + b2
    h = 1.0 / (1.0 + jnp.exp(-z))
    return jnp.dot(h.astype(bf), w3.astype(bf), preferred_element_type=f32) + b3


if __name__ == "__main__":
    # Small shapes consistent with the module's forward.
    batch, input_size, h1_n, h2_n, output_size = 8, 32, 64, 32, 16

    key = jax.random.PRNGKey(0)
    k_x, k_p = jax.random.split(key)

    x = jax.random.normal(k_x, (batch, input_size), jnp.float32)
    params = init_params(k_p, input_size, h1_n, h2_n, output_size)

    out = mlp_forward(x, *params)
    out = jax.block_until_ready(out)

    ref = reference_forward_bf16(x, *params)
    assert out.shape == (batch, output_size)
    assert jnp.allclose(out, ref, atol=1e-2, rtol=1e-2), (
        "mismatch vs reference, max abs diff = %f" % float(jnp.max(jnp.abs(out - ref)))
    )

    print("KERNEL_OK")
</pallas_src>

<mosaic_0001>
module attributes {stable_mosaic.version = 11 : i64} {
  func.func @_mlp_kernel(%arg0: i32, %arg1: memref<8x128xbf16, #tpu.memory_space<vmem>>, %arg2: memref<3x128x128xbf16, #tpu.memory_space<vmem>>, %arg3: memref<3x1x128xf32, #tpu.memory_space<vmem>>, %arg4: memref<8x128xf32, #tpu.memory_space<vmem>>) attributes {dimension_semantics = [#tpu.dimension_semantics<parallel>], iteration_bounds = array<i64: 1>, scalar_prefetch = 0 : i64, scratch_operands = 0 : i64, tpu.core_type = #tpu.core_type<tc>, window_params = [{transform_indices = @transform_0, window_bounds = array<i64: 8, 128>}, {pipeline_mode = #tpu.pipeline_mode<synchronous>, transform_indices = @transform_1, window_bounds = array<i64: 3, 128, 128>}, {pipeline_mode = #tpu.pipeline_mode<synchronous>, transform_indices = @transform_2, window_bounds = array<i64: 3, 1, 128>}, {transform_indices = @transform_3, window_bounds = array<i64: 8, 128>}]} {
    %c0 = arith.constant 0 : index
    %c0_0 = arith.constant 0 : index
    %0 = vector.load %arg1[%c0, %c0_0] : memref<8x128xbf16, #tpu.memory_space<vmem>>, vector<8x128xbf16>
    %c0_1 = arith.constant 0 : index
    %c0_2 = arith.constant 0 : index
    %c0_3 = arith.constant 0 : index
    %1 = vector.load %arg2[%c0_1, %c0_2, %c0_3] : memref<3x128x128xbf16, #tpu.memory_space<vmem>>, vector<1x128x128xbf16>
    %2 = vector.shape_cast %1 : vector<1x128x128xbf16> to vector<128x128xbf16>
    %cst = arith.constant dense<0.000000e+00> : vector<8x128xf32>
    %3 = tpu.matmul %0, %2, %cst {dimension_numbers = #tpu.dot_dimension_numbers<[1], [0], [0], [1], [0, 0, 1, 1], [], []>} : vector<8x128xbf16>, vector<128x128xbf16>, vector<8x128xf32> -> vector<8x128xf32>
    %c0_4 = arith.constant 0 : index
    %c0_5 = arith.constant 0 : index
    %c0_6 = arith.constant 0 : index
    %4 = vector.load %arg3[%c0_4, %c0_5, %c0_6] : memref<3x1x128xf32, #tpu.memory_space<vmem>>, vector<1x1x128xf32>
    %5 = vector.shape_cast %4 : vector<1x1x128xf32> to vector<1x128xf32>
    %6 = vector.broadcast %5 : vector<1x128xf32> to vector<8x128xf32>
    %7 = arith.addf %3, %6 : vector<8x128xf32>
    %cst_7 = arith.constant 0.000000e+00 : f32
    %8 = vector.broadcast %cst_7 : f32 to vector<8x128xf32>
    %9 = arith.subf %8, %7 : vector<8x128xf32>
    %10 = math.exp %9 : vector<8x128xf32>
    %cst_8 = arith.constant 1.000000e+00 : f32
    %11 = vector.broadcast %cst_8 : f32 to vector<8x128xf32>
    %12 = arith.addf %11, %10 : vector<8x128xf32>
    %cst_9 = arith.constant 1.000000e+00 : f32
    %13 = vector.broadcast %cst_9 : f32 to vector<8x128xf32>
    %14 = arith.divf %13, %12 : vector<8x128xf32>
    %15 = arith.truncf %14 : vector<8x128xf32> to vector<8x128xbf16>
    %c1 = arith.constant 1 : index
    %c0_10 = arith.constant 0 : index
    %c0_11 = arith.constant 0 : index
    %16 = vector.load %arg2[%c1, %c0_10, %c0_11] : memref<3x128x128xbf16, #tpu.memory_space<vmem>>, vector<1x128x128xbf16>
    %17 = vector.shape_cast %16 : vector<1x128x128xbf16> to vector<128x128xbf16>
    %cst_12 = arith.constant dense<0.000000e+00> : vector<8x128xf32>
    %18 = tpu.matmul %15, %17, %cst_12 {dimension_numbers = #tpu.dot_dimension_numbers<[1], [0], [0], [1], [0, 0, 1, 1], [], []>} : vector<8x128xbf16>, vector<128x128xbf16>, vector<8x128xf32> -> vector<8x128xf32>
    %c1_13 = arith.constant 1 : index
    %c0_14 = arith.constant 0 : index
    %c0_15 = arith.constant 0 : index
    %19 = vector.load %arg3[%c1_13, %c0_14, %c0_15] : memref<3x1x128xf32, #tpu.memory_space<vmem>>, vector<1x1x128xf32>
    %20 = vector.shape_cast %19 : vector<1x1x128xf32> to vector<1x128xf32>
    %21 = vector.broadcast %20 : vector<1x128xf32> to vector<8x128xf32>
    %22 = arith.addf %18, %21 : vector<8x128xf32>
    %cst_16 = arith.constant 0.000000e+00 : f32
    %23 = vector.broadcast %cst_16 : f32 to vector<8x128xf32>
    %24 = arith.subf %23, %22 : vector<8x128xf32>
    %25 = math.exp %24 : vector<8x128xf32>
    %cst_17 = arith.constant 1.000000e+00 : f32
    %26 = vector.broadcast %cst_17 : f32 to vector<8x128xf32>
    %27 = arith.addf %26, %25 : vector<8x128xf32>
    %cst_18 = arith.constant 1.000000e+00 : f32
    %28 = vector.broadcast %cst_18 : f32 to vector<8x128xf32>
    %29 = arith.divf %28, %27 : vector<8x128xf32>
    %30 = arith.truncf %29 : vector<8x128xf32> to vector<8x128xbf16>
    %c2 = arith.constant 2 : index
    %c0_19 = arith.constant 0 : index
    %c0_20 = arith.constant 0 : index
    %31 = vector.load %arg2[%c2, %c0_19, %c0_20] : memref<3x128x128xbf16, #tpu.memory_space<vmem>>, vector<1x128x128xbf16>
    %32 = vector.shape_cast %31 : vector<1x128x128xbf16> to vector<128x128xbf16>
    %cst_21 = arith.constant dense<0.000000e+00> : vector<8x128xf32>
    %33 = tpu.matmul %30, %32, %cst_21 {dimension_numbers = #tpu.dot_dimension_numbers<[1], [0], [0], [1], [0, 0, 1, 1], [], []>} : vector<8x128xbf16>, vector<128x128xbf16>, vector<8x128xf32> -> vector<8x128xf32>
    %c2_22 = arith.constant 2 : index
    %c0_23 = arith.constant 0 : index
    %c0_24 = arith.constant 0 : index
    %34 = vector.load %arg3[%c2_22, %c0_23, %c0_24] : memref<3x1x128xf32, #tpu.memory_space<vmem>>, vector<1x1x128xf32>
    %35 = vector.shape_cast %34 : vector<1x1x128xf32> to vector<1x128xf32>
    %36 = vector.broadcast %35 : vector<1x128xf32> to vector<8x128xf32>
    %37 = arith.addf %33, %36 : vector<8x128xf32>
    %c0_25 = arith.constant 0 : index
    %c0_26 = arith.constant 0 : index
    %38 = vector.load %arg4[%c0_25, %c0_26] : memref<8x128xf32, #tpu.memory_space<vmem>>, vector<8x128xf32>
    tpu.vector_store %arg4[%c0_25, %c0_26], %37 {strides = array<i32>} : memref<8x128xf32, #tpu.memory_space<vmem>>, vector<8x128xf32>,
    return
  }
  func.func @transform_0(%arg0: i32) -> (i32, i32) {
    %c0_i32 = arith.constant 0 : i32
    %c0_i32_0 = arith.constant 0 : i32
    return %arg0, %c0_i32 : i32, i32
  }
  func.func @transform_1(%arg0: i32) -> (i32, i32, i32) {
    %c0_i32 = arith.constant 0 : i32
    %c0_i32_0 = arith.constant 0 : i32
    %c0_i32_1 = arith.constant 0 : i32
    %c0_i32_2 = arith.constant 0 : i32
    return %c0_i32, %c0_i32_0, %c0_i32_1 : i32, i32, i32
  }
  func.func @transform_2(%arg0: i32) -> (i32, i32, i32) {
    %c0_i32 = arith.constant 0 : i32
    %c0_i32_0 = arith.constant 0 : i32
    %c0_i32_1 = arith.constant 0 : i32
    %c0_i32_2 = arith.constant 0 : i32
    return %c0_i32, %c0_i32_0, %c0_i32_1 : i32, i32, i32
  }
  func.func @transform_3(%arg0: i32) -> (i32, i32) {
    %c0_i32 = arith.constant 0 : i32
    %c0_i32_0 = arith.constant 0 : i32
    return %arg0, %c0_i32 : i32, i32
  }
}

</mosaic_0001>

<llo_original>
// kernel: tpu_custom_call.1
$region0: #{tpu_custom_call.1}
  #allocation0 [shape = 'u32[]', space=smem, size = 0x4, offset = 0x4, fixed_abs, tag = 'smem constant byte address 0x4 - core index']
  #allocation1 [shape = 'u32[144,128]{1,0:T(1,128)}', space=vmem, size = 0x12000, scoped, tag = 'internal scratch']
  %s0 = inlined_call_operand.hbm [shape: bf16[8,128], index: 0, kind: input, shape index: {}]
  %s1 = inlined_call_operand.hbm [shape: bf16[3,128,128], index: 1, kind: input, shape index: {}]
  %s2 = inlined_call_operand.vmem [shape: f32[3,1,128], index: 2, kind: input, shape index: {}]
  %s3 = inlined_call_operand.hbm [shape: f32[8,128], index: 3, kind: output, shape index: {}]
  %s4 = sld [smem:[#allocation0]]
  $region30: #{tpu_custom_call.1} parent=0
    _
  %s6 = ssub.s32 1, %s4
  %s7 = scalar_select 0, %s6, %s4
  $region1: #{tpu_custom_call.1} parent=0
    #allocation2 [shape = 'u8[2048]{0}', space=vmem, size = 0x800, scoped, tag = 'input window, operand 0, single buffered']
    #allocation3 [shape = 's32[1]{0}', space=sflag, size = 0x4, scoped, tag = 'scoped memory for tpu_custom_call.1']
    #allocation4 [shape = 's32[1]{0}', space=sflag, size = 0x4, scoped, tag = 'scoped memory for tpu_custom_call.1']
    #allocation5 [shape = 'u8[98304]{0}', space=vmem, size = 0x18000, scoped, tag = 'input window, operand 1, single buffered']
    #allocation6 [shape = 's32[1]{0}', space=sflag, size = 0x4, scoped, tag = 'scoped memory for tpu_custom_call.1']
    #allocation7 [shape = 'u8[4096]{0}', space=vmem, size = 0x1000, scoped, tag = 'output window, operand 0, single buffered']
    %8 = vsyncpa [#allocation3], 0
    %9 = vsyncpa [#allocation6], 0
    %10 = vsyncpa [#allocation4], 0
    // Predicated region
    $region2: #{tpu_custom_call.1} parent=1 // pred_check
      _
    $region3: #{tpu_custom_call.1} parent=1 // pred_check_branch
      %12 = sbr.rel (0) target = $region5
    $region4: #{tpu_custom_call.1} parent=1 // pred_region
      %s14 = ssub.s32 64, 64
      %15 = vsyncadd [#allocation3], %s14
      %s17 = sshll.u32 [#allocation2], 4
      %s18 = int_to_ptr.vmem [resolvable:$true] %s17
      %20 = dma.hbm_to_vmem [thread:$0]  %s0, 64, %s18, [#allocation3]
    $region5: #{tpu_custom_call.1} parent=1 // pred_fallthru
      _
    // Predicated region
    $region6: #{tpu_custom_call.1} parent=1 // pred_check
      _
    $region7: #{tpu_custom_call.1} parent=1 // pred_check_branch
      %22 = sbr.rel (0) target = $region9
    $region8: #{tpu_custom_call.1} parent=1 // pred_region
      %s24 = ssub.s32 3072, 3072
      %25 = vsyncadd [#allocation6], %s24
      %s26 = sshll.u32 [#allocation5], 4
      %s27 = int_to_ptr.vmem [resolvable:$true] %s26
      %32 = dma.hbm_to_vmem [thread:$0]  %s1, 3072, %s27, [#allocation6], 64, 64, 4
    $region9: #{tpu_custom_call.1} parent=1 // pred_fallthru
      _
    // Predicated region
    $region10: #{tpu_custom_call.1} parent=1 // pred_check
      _
    $region11: #{tpu_custom_call.1} parent=1 // pred_check_branch
      %34 = sbr.rel (0) target = $region13
    $region12: #{tpu_custom_call.1} parent=1 // pred_region
      _
    $region13: #{tpu_custom_call.1} parent=1 // pred_fallthru
      _
    // Predicated region
    $region14: #{tpu_custom_call.1} parent=1 // pred_check
      _
    $region15: #{tpu_custom_call.1} parent=1 // pred_check_branch
      %36 = sbr.rel (0) target = $region17
    $region16: #{tpu_custom_call.1} parent=1 // pred_region
      %37 = dma.done [#allocation3], 64
    $region17: #{tpu_custom_call.1} parent=1 // pred_fallthru
      _
    // Predicated region
    $region18: #{tpu_custom_call.1} parent=1 // pred_check
      _
    $region19: #{tpu_custom_call.1} parent=1 // pred_check_branch
      %39 = sbr.rel (0) target = $region21
    $region20: #{tpu_custom_call.1} parent=1 // pred_region
      %40 = dma.done [#allocation6], 3072
    $region21: #{tpu_custom_call.1} parent=1 // pred_fallthru
      _
    %v42 = vld [vmem:[#allocation2] sm:$0xf]
    %v43 = vld [vmem:[#allocation5] sm:$0xf]
    %v44 = vld [vmem:[#allocation5 + $0x4] sm:$0xf]
    %v45 = vld [vmem:[#allocation5 + $0x8] sm:$0xf]
    %v46 = vld [vmem:[#allocation5 + $0xc] sm:$0xf]
    %v47 = vld [vmem:[#allocation5 + $0x10] sm:$0xf]
    %v48 = vld [vmem:[#allocation5 + $0x14] sm:$0xf]
    %v49 = vld [vmem:[#allocation5 + $0x18] sm:$0xf]
    %v50 = vld [vmem:[#allocation5 + $0x1c] sm:$0xf]
    %v51 = vld [vmem:[#allocation5 + $0x20] sm:$0xf]
    %v52 = vld [vmem:[#allocation5 + $0x24] sm:$0xf]
    %v53 = vld [vmem:[#allocation5 + $0x28] sm:$0xf]
    %v54 = vld [vmem:[#allocation5 + $0x2c] sm:$0xf]
    %v55 = vld [vmem:[#allocation5 + $0x30] sm:$0xf]
    %v56 = vld [vmem:[#allocation5 + $0x34] sm:$0xf]
    %v57 = vld [vmem:[#allocation5 + $0x38] sm:$0xf]
    %v58 = vld [vmem:[#allocation5 + $0x3c] sm:$0xf]
    %v59 = vld [vmem:[%s2] sm:$0x1]
    %v61 = vlaneseq
    %v62 = vshrl.u32 %v61, 7
    %v63 = vsub.s32 0, %v62
    %v64 = vrot.slane %v59, %v63
    %v82 = vunpack.c.l.b16 %v43
    %v83 = vunpack.c.l.b16 %v44
    %v84 = vunpack.c.l.b16 %v45
    %v85 = vunpack.c.l.b16 %v46
    %v86 = vunpack.c.l.b16 %v47
    %v87 = vunpack.c.l.b16 %v48
    %v88 = vunpack.c.l.b16 %v49
    %v89 = vunpack.c.l.b16 %v50
    %v90 = vunpack.c.l.b16 %v51
    %v91 = vunpack.c.l.b16 %v52
    %v92 = vunpack.c.l.b16 %v53
    %v93 = vunpack.c.l.b16 %v54
    %v94 = vunpack.c.l.b16 %v55
    %v95 = vunpack.c.l.b16 %v56
    %v96 = vunpack.c.l.b16 %v57
    %v97 = vunpack.c.l.b16 %v58
    %v98 = vpack.c.b16 %v83, %v82
    %v99 = vpack.c.b16 %v85, %v84
    %v100 = vpack.c.b16 %v87, %v86
    %v101 = vpack.c.b16 %v89, %v88
    %v102 = vpack.c.b16 %v91, %v90
    %v103 = vpack.c.b16 %v93, %v92
    %v104 = vpack.c.b16 %v95, %v94
    %v105 = vpack.c.b16 %v97, %v96
    %114 = vmatprep.subr.bf16.mxu0 0
    %115 = vmatpush1.bf16.msra.mxu0 %v105
    %116 = vmatprep.subr.bf16.mxu0 0
    %117 = vmatpush1.bf16.msra.mxu0 %v104
    %118 = vmatprep.subr.bf16.mxu0 0
    %119 = vmatpush1.bf16.msra.mxu0 %v103
    %120 = vmatprep.subr.bf16.mxu0 0
    %121 = vmatpush1.bf16.msra.mxu0 %v102
    %122 = vmatprep.subr.bf16.mxu0 0
    %123 = vmatpush1.bf16.msra.mxu0 %v101
    %124 = vmatprep.subr.bf16.mxu0 0
    %125 = vmatpush1.bf16.msra.mxu0 %v100
    %126 = vmatprep.subr.bf16.mxu0 0
    %127 = vmatpush1.bf16.msra.mxu0 %v99
    %128 = vmatprep.subr.bf16.mxu0 0
    %129 = vmatpush1.bf16.msra.mxu0 %v98
    %130 = vmatprep.subr.bf16.mxu0 0
    %131 = vmatpush2.bf16.msra.mxu0 0
    %132 = vmatprep.subr.bf16.mxu0 0
    %133 = vmatpush2.bf16.msra.mxu0 0
    %134 = vmatprep.subr.bf16.mxu0 0
    %135 = vmatpush2.bf16.msra.mxu0 0
    %136 = vmatprep.subr.bf16.mxu0 0
    %137 = vmatpush2.bf16.msra.mxu0 0
    %138 = vmatprep.subr.bf16.mxu0 0
    %139 = vmatpush2.bf16.msra.mxu0 0
    %140 = vmatprep.subr.bf16.mxu0 0
    %141 = vmatpush2.bf16.msra.mxu0 0
    %142 = vmatprep.subr.bf16.mxu0 0
    %143 = vmatpush2.bf16.msra.mxu0 0
    %144 = vmatprep.subr.bf16.mxu0 0
    %145 = vmatpush2.bf16.msra.mxu0 0
    %146 = vmatprep.mubr.bf16.mxu0 0
    %147 = vmatmul.mubr.bf16.gmra.mxu0 %v42
    %v148 = vpop.f32.mrf.mxu0
    %v149 = vadd.f32 %v64, %v148
    %v150 = vpop.f32.mrf.mxu0
    %v151 = vpop.f32.mrf.mxu0
    %v152 = vpop.f32.mrf.mxu0
    %153 = vdwg.mxu0
    %v154 = vsub.f32 0.0, %v149
    %v155 = vmul.f32 %v154, 1.442695
    %v156 = vpow.pop %v155
    %v157 = vadd.f32 %v156, 1.0
    %v158 = vrcp.pop %v157
    %v159 = vmul.f32 1.0, %v158
    %v160 = vpack.c.bf16 %v159, %v159
    %s161 = scalar_lea.vmem [#allocation5], 64
    %v162 = vld [vmem:[%s161] sm:$0xf]
    %v163 = vld [vmem:[%s161 + $0x4] sm:$0xf]
    %v164 = vld [vmem:[%s161 + $0x8] sm:$0xf]
    %v165 = vld [vmem:[%s161 + $0xc] sm:$0xf]
    %v166 = vld [vmem:[%s161 + $0x10] sm:$0xf]
    %v167 = vld [vmem:[%s161 + $0x14] sm:$0xf]
    %v168 = vld [vmem:[%s161 + $0x18] sm:$0xf]
    %v169 = vld [vmem:[%s161 + $0x1c] sm:$0xf]
    %v170 = vld [vmem:[%s161 + $0x20] sm:$0xf]
    %v171 = vld [vmem:[%s161 + $0x24] sm:$0xf]
    %v172 = vld [vmem:[%s161 + $0x28] sm:$0xf]
    %v173 = vld [vmem:[%s161 + $0x2c] sm:$0xf]
    %v174 = vld [vmem:[%s161 + $0x30] sm:$0xf]
    %v175 = vld [vmem:[%s161 + $0x34] sm:$0xf]
    %v176 = vld [vmem:[%s161 + $0x38] sm:$0xf]
    %v177 = vld [vmem:[%s161 + $0x3c] sm:$0xf]
    %s178 = scalar_lea.vmem %s2, 1
    %v179 = vld [vmem:[%s178] sm:$0x1]
    %v181 = vlaneseq
    %v182 = vshrl.u32 %v181, 7
    %v183 = vsub.s32 0, %v182
    %v184 = vrot.slane %v179, %v183
    %v202 = vunpack.c.l.b16 %v162
    %v203 = vunpack.c.l.b16 %v163
    %v204 = vunpack.c.l.b16 %v164
    %v205 = vunpack.c.l.b16 %v165
    %v206 = vunpack.c.l.b16 %v166
    %v207 = vunpack.c.l.b16 %v167
    %v208 = vunpack.c.l.b16 %v168
    %v209 = vunpack.c.l.b16 %v169
    %v210 = vunpack.c.l.b16 %v170
    %v211 = vunpack.c.l.b16 %v171
    %v212 = vunpack.c.l.b16 %v172
    %v213 = vunpack.c.l.b16 %v173
    %v214 = vunpack.c.l.b16 %v174
    %v215 = vunpack.c.l.b16 %v175
    %v216 = vunpack.c.l.b16 %v176
    %v217 = vunpack.c.l.b16 %v177
    %v218 = vpack.c.b16 %v203, %v202
    %v219 = vpack.c.b16 %v205, %v204
    %v220 = vpack.c.b16 %v207, %v206
    %v221 = vpack.c.b16 %v209, %v208
    %v222 = vpack.c.b16 %v211, %v210
    %v223 = vpack.c.b16 %v213, %v212
    %v224 = vpack.c.b16 %v215, %v214
    %v225 = vpack.c.b16 %v217, %v216
    %234 = vmatprep.subr.bf16.mxu0 0
    %235 = vmatpush1.bf16.msra.mxu0 %v225
    %236 = vmatprep.subr.bf16.mxu0 0
    %237 = vmatpush1.bf16.msra.mxu0 %v224
    %238 = vmatprep.subr.bf16.mxu0 0
    %239 = vmatpush1.bf16.msra.mxu0 %v223
    %240 = vmatprep.subr.bf16.mxu0 0
    %241 = vmatpush1.bf16.msra.mxu0 %v222
    %242 = vmatprep.subr.bf16.mxu0 0
    %243 = vmatpush1.bf16.msra.mxu0 %v221
    %244 = vmatprep.subr.bf16.mxu0 0
    %245 = vmatpush1.bf16.msra.mxu0 %v220
    %246 = vmatprep.subr.bf16.mxu0 0
    %247 = vmatpush1.bf16.msra.mxu0 %v219
    %248 = vmatprep.subr.bf16.mxu0 0
    %249 = vmatpush1.bf16.msra.mxu0 %v218
    %250 = vmatprep.subr.bf16.mxu0 0
    %251 = vmatpush2.bf16.msra.mxu0 0
    %252 = vmatprep.subr.bf16.mxu0 0
    %253 = vmatpush2.bf16.msra.mxu0 0
    %254 = vmatprep.subr.bf16.mxu0 0
    %255 = vmatpush2.bf16.msra.mxu0 0
    %256 = vmatprep.subr.bf16.mxu0 0
    %257 = vmatpush2.bf16.msra.mxu0 0
    %258 = vmatprep.subr.bf16.mxu0 0
    %259 = vmatpush2.bf16.msra.mxu0 0
    %260 = vmatprep.subr.bf16.mxu0 0
    %261 = vmatpush2.bf16.msra.mxu0 0
    %262 = vmatprep.subr.bf16.mxu0 0
    %263 = vmatpush2.bf16.msra.mxu0 0
    %264 = vmatprep.subr.bf16.mxu0 0
    %265 = vmatpush2.bf16.msra.mxu0 0
    %266 = vmatprep.mubr.bf16.mxu0 0
    %267 = vmatmul.mubr.bf16.gmra.mxu0 %v160
    %v268 = vpop.f32.mrf.mxu0
    %v269 = vadd.f32 %v184, %v268
    %v270 = vpop.f32.mrf.mxu0
    %v271 = vpop.f32.mrf.mxu0
    %v272 = vpop.f32.mrf.mxu0
    %273 = vdwg.mxu0
    %v274 = vsub.f32 0.0, %v269
    %v275 = vmul.f32 %v274, 1.442695
    %v276 = vpow.pop %v275
    %v277 = vadd.f32 %v276, 1.0
    %v278 = vrcp.pop %v277
    %v279 = vmul.f32 1.0, %v278
    %v280 = vpack.c.bf16 %v279, %v279
    %s281 = scalar_lea.vmem [#allocation5], 128
    %v282 = vld [vmem:[%s281] sm:$0xf]
    %v283 = vld [vmem:[%s281 + $0x4] sm:$0xf]
    %v284 = vld [vmem:[%s281 + $0x8] sm:$0xf]
    %v285 = vld [vmem:[%s281 + $0xc] sm:$0xf]
    %v286 = vld [vmem:[%s281 + $0x10] sm:$0xf]
    %v287 = vld [vmem:[%s281 + $0x14] sm:$0xf]
    %v288 = vld [vmem:[%s281 + $0x18] sm:$0xf]
    %v289 = vld [vmem:[%s281 + $0x1c] sm:$0xf]
    %v290 = vld [vmem:[%s281 + $0x20] sm:$0xf]
    %v291 = vld [vmem:[%s281 + $0x24] sm:$0xf]
    %v292 = vld [vmem:[%s281 + $0x28] sm:$0xf]
    %v293 = vld [vmem:[%s281 + $0x2c] sm:$0xf]
    %v294 = vld [vmem:[%s281 + $0x30] sm:$0xf]
    %v295 = vld [vmem:[%s281 + $0x34] sm:$0xf]
    %v296 = vld [vmem:[%s281 + $0x38] sm:$0xf]
    %v297 = vld [vmem:[%s281 + $0x3c] sm:$0xf]
    %s298 = scalar_lea.vmem %s2, 2
    %v299 = vld [vmem:[%s298] sm:$0x1]
    %v301 = vlaneseq
    %v302 = vshrl.u32 %v301, 7
    %v303 = vsub.s32 0, %v302
    %v304 = vrot.slane %v299, %v303
    %v322 = vunpack.c.l.b16 %v282
    %v323 = vunpack.c.l.b16 %v283
    %v324 = vunpack.c.l.b16 %v284
    %v325 = vunpack.c.l.b16 %v285
    %v326 = vunpack.c.l.b16 %v286
    %v327 = vunpack.c.l.b16 %v287
    %v328 = vunpack.c.l.b16 %v288
    %v329 = vunpack.c.l.b16 %v289
    %v330 = vunpack.c.l.b16 %v290
    %v331 = vunpack.c.l.b16 %v291
    %v332 = vunpack.c.l.b16 %v292
    %v333 = vunpack.c.l.b16 %v293
    %v334 = vunpack.c.l.b16 %v294
    %v335 = vunpack.c.l.b16 %v295
    %v336 = vunpack.c.l.b16 %v296
    %v337 = vunpack.c.l.b16 %v297
    %v338 = vpack.c.b16 %v323, %v322
    %v339 = vpack.c.b16 %v325, %v324
    %v340 = vpack.c.b16 %v327, %v326
    %v341 = vpack.c.b16 %v329, %v328
    %v342 = vpack.c.b16 %v331, %v330
    %v343 = vpack.c.b16 %v333, %v332
    %v344 = vpack.c.b16 %v335, %v334
    %v345 = vpack.c.b16 %v337, %v336
    %354 = vmatprep.subr.bf16.mxu0 0
    %355 = vmatpush1.bf16.msra.mxu0 %v345
    %356 = vmatprep.subr.bf16.mxu0 0
    %357 = vmatpush1.bf16.msra.mxu0 %v344
    %358 = vmatprep.subr.bf16.mxu0 0
    %359 = vmatpush1.bf16.msra.mxu0 %v343
    %360 = vmatprep.subr.bf16.mxu0 0
    %361 = vmatpush1.bf16.msra.mxu0 %v342
    %362 = vmatprep.subr.bf16.mxu0 0
    %363 = vmatpush1.bf16.msra.mxu0 %v341
    %364 = vmatprep.subr.bf16.mxu0 0
    %365 = vmatpush1.bf16.msra.mxu0 %v340
    %366 = vmatprep.subr.bf16.mxu0 0
    %367 = vmatpush1.bf16.msra.mxu0 %v339
    %368 = vmatprep.subr.bf16.mxu0 0
    %369 = vmatpush1.bf16.msra.mxu0 %v338
    %370 = vmatprep.subr.bf16.mxu0 0
    %371 = vmatpush2.bf16.msra.mxu0 0
    %372 = vmatprep.subr.bf16.mxu0 0
    %373 = vmatpush2.bf16.msra.mxu0 0
    %374 = vmatprep.subr.bf16.mxu0 0
    %375 = vmatpush2.bf16.msra.mxu0 0
    %376 = vmatprep.subr.bf16.mxu0 0
    %377 = vmatpush2.bf16.msra.mxu0 0
    %378 = vmatprep.subr.bf16.mxu0 0
    %379 = vmatpush2.bf16.msra.mxu0 0
    %380 = vmatprep.subr.bf16.mxu0 0
    %381 = vmatpush2.bf16.msra.mxu0 0
    %382 = vmatprep.subr.bf16.mxu0 0
    %383 = vmatpush2.bf16.msra.mxu0 0
    %384 = vmatprep.subr.bf16.mxu0 0
    %385 = vmatpush2.bf16.msra.mxu0 0
    %386 = vmatprep.mubr.bf16.mxu0 0
    %387 = vmatmul.mubr.bf16.gmra.mxu0 %v280
    %v388 = vpop.f32.mrf.mxu0
    %v389 = vadd.f32 %v304, %v388
    %v390 = vpop.f32.mrf.mxu0
    %v391 = vpop.f32.mrf.mxu0
    %v392 = vpop.f32.mrf.mxu0
    %393 = vdwg.mxu0
    %394 = vst [vmem:[#allocation7] sm:$0xff] %v389
    // Predicated region
    $region22: #{tpu_custom_call.1} parent=1 // pred_check
      _
    $region23: #{tpu_custom_call.1} parent=1 // pred_check_branch
      %396 = sbr.rel (0) target = $region25
    $region24: #{tpu_custom_call.1} parent=1 // pred_region
      %s398 = ssub.s32 128, 128
      %399 = vsyncadd [#allocation4], %s398
      %s401 = sshll.u32 [#allocation7], 4
      %s402 = int_to_ptr.vmem [resolvable:$true] %s401
      %404 = dma.vmem_to_hbm [thread:$0]  %s402, 128, %s3, [#allocation4]
    $region25: #{tpu_custom_call.1} parent=1 // pred_fallthru
      _
    // Predicated region
    $region26: #{tpu_custom_call.1} parent=1 // pred_check
      _
    $region27: #{tpu_custom_call.1} parent=1 // pred_check_branch
      %406 = sbr.rel (0) target = $region29
    $region28: #{tpu_custom_call.1} parent=1 // pred_region
      %407 = dma.done [#allocation4], 128
    $region29: #{tpu_custom_call.1} parent=1 // pred_fallthru
      _
    %408 = vsyncpa [#allocation3], 1
    %409 = vsyncpa [#allocation6], 1
    %410 = vsyncpa [#allocation4], 1

</llo_original>
